<compile_context>
chip_gen: v5e
topology: v5e:2x2
jax: 0.10.0
libtpu: 0.0.40
codegen_flags: <defaults>
</compile_context>

<pallas_src>
import functools

import jax
import jax.numpy as jnp
from jax.experimental import pallas as pl
from jax.experimental.pallas import tpu as pltpu


def _drop_path_kernel(u_ref, x_ref, o_ref, *, keep_prob: float, scale_by_keep: bool):
    # u_ref: (TB, 1) uniform draws in [0, 1)
    # x_ref: (TB, TF) tile of the flattened input
    # o_ref: (TB, TF) tile of the output
    scale = (1.0 / keep_prob) if (scale_by_keep and keep_prob > 0.0) else 1.0
    mask = jnp.where(u_ref[...] < keep_prob, scale, 0.0)        # (TB, 1) float32
    o_ref[...] = x_ref[...] * mask.astype(x_ref.dtype)          # multiply in input dtype


def _round_up(n: int, m: int) -> int:
    return -(-n // m) * m


def _vmem_capacity_bytes() -> int:
    # Generation-aware sizing; fall back to the smallest per-TC VMEM (v7x: 64 MiB)
    # so the derived limits are safe everywhere if the query is unavailable.
    try:
        return int(pltpu.get_tpu_info().vmem_capacity_bytes)
    except Exception:
        return 64 << 20


def drop_path_pallas(x, key, drop_prob: float = 0.0, scale_by_keep: bool = True,
                     training: bool = True):
    """Pallas DropPath forward.  x: any shape with leading batch dim."""
    if drop_prob == 0.0 or not training:
        return x
    if not jnp.issubdtype(x.dtype, jnp.floating):
        raise TypeError("drop_path_pallas expects a floating-point input")

    keep_prob = 1.0 - drop_prob
    B = x.shape[0]
    orig_shape = x.shape
    xf = x.reshape(B, -1)                                        # (B, F)
    F = xf.shape[1]
    itemsize = jnp.dtype(x.dtype).itemsize
    pack = max(8, 32 // itemsize)                                # sublane pack: 8/16/32

    # Per-sample uniform draws (B scalars of glue; the B*F hot path is in-kernel).
    u = jax.random.uniform(key, (B, 1), dtype=jnp.float32)

    # ---- tile selection (mem-bound elementwise op) ---------------------------
    capacity = _vmem_capacity_bytes()
    # ~capacity/12 per block: ~5 MiB on v7x (64 MiB VMEM), ~10 MiB on v5e/v6e.
    budget = int(min(16 << 20, max(2 << 20, capacity // 12)))

    # 1) Feature (lane) tile first: TF = F if a minimal-height block fits,
    #    otherwise the largest 128-multiple in budget, preferring a divisor of F.
    tf_max = max(128, ((budget // (pack * itemsize)) // 128) * 128)
    if F <= tf_max:
        TF = F                                                   # full feature axis
    else:
        TF = tf_max
        # Prefer a TF that divides F (no ragged, masked-store last block), but
        # don't shrink below half the budgeted width for it.
        k_max = TF // 128
        k_min = max(1, k_max // 2)
        for k in range(k_max, k_min - 1, -1):
            cand = k * 128
            if F % cand == 0:
                TF = cand
                break

    # 2) Batch tile from the remaining budget, rounded to the sublane pack.
    tf_padded = _round_up(TF, 128)
    TB = max(pack, (budget // (tf_padded * itemsize)) // pack * pack)
    if TB >= B:
        TB = B                                                   # full batch axis

    # 3) For large inputs, guarantee >= 4 grid steps (>= 2 per TensorCore on
    #    v7x) so double-buffering survives the megacore split.  Split batch
    #    first (keeps TF = F rows contiguous), then the feature axis.
    total_bytes = B * F * itemsize
    if total_bytes >= (4 << 20):
        while pl.cdiv(B, TB) * pl.cdiv(F, TF) < 4 and TB > pack:
            TB = max(pack, _round_up(TB // 2, pack))
        while pl.cdiv(B, TB) * pl.cdiv(F, TF) < 4 and TF > 128:
            TF = max(128, _round_up(TF // 2, 128))

    grid = (pl.cdiv(B, TB), pl.cdiv(F, TF))

    # Explicit VMEM budget: double-buffered input + output tiles + the resident
    # (padded) u block, plus headroom; capped at ~70% of this chip's VMEM.
    padded_TB = _round_up(TB, pack)
    padded_TF = _round_up(TF, 128)
    block_bytes = padded_TB * padded_TF * itemsize
    u_bytes = _round_up(TB, 8) * 128 * 4
    vmem_limit = int(min(max(4 * block_bytes + 2 * u_bytes + (4 << 20), 16 << 20),
                         (capacity * 7) // 10))

    kernel = functools.partial(_drop_path_kernel,
                               keep_prob=keep_prob,
                               scale_by_keep=scale_by_keep)

    out_flat = pl.pallas_call(
        kernel,
        out_shape=jax.ShapeDtypeStruct((B, F), x.dtype),
        grid_spec=pltpu.PrefetchScalarGridSpec(
            num_scalar_prefetch=0,
            grid=grid,
            in_specs=[
                pl.BlockSpec((TB, 1), lambda i, j: (i, 0)),      # per-sample uniforms
                pl.BlockSpec((TB, TF), lambda i, j: (i, j)),     # x tile
            ],
            out_specs=pl.BlockSpec((TB, TF), lambda i, j: (i, j)),
        ),
        compiler_params=pltpu.CompilerParams(
            dimension_semantics=("parallel", "parallel"),
            vmem_limit_bytes=vmem_limit,
        ),
    )(u, xf)

    return out_flat.reshape(orig_shape)
    # TODO(synk): optional HBM-read skip for fully-dropped batch tiles (scalar-
    # prefetched keep flags + manual DMA) was left out to keep wide lane tiles.


if __name__ == "__main__":
    key = jax.random.PRNGKey(0)
    kx, kmask = jax.random.split(key)

    # NCHW-style input, small shapes: batch=2, channels=4, spatial=16x16.
    x = jax.random.normal(kx, (2, 4, 16, 16), dtype=jnp.float32)

    drop_prob = 0.5
    scale_by_keep = True

    # Training mode: stochastic depth active.
    y = drop_path_pallas(x, kmask, drop_prob=drop_prob,
                         scale_by_keep=scale_by_keep, training=True)
    y = jax.block_until_ready(y)

    # Pure-JAX reference with identical randomness (tolerance, not bit-match).
    keep_prob = 1.0 - drop_prob
    u = jax.random.uniform(kmask, (x.shape[0], 1), dtype=jnp.float32)
    mask = jnp.where(u < keep_prob, 1.0 / keep_prob, 0.0).reshape(
        (x.shape[0],) + (1,) * (x.ndim - 1))
    y_ref = x * mask
    assert jnp.allclose(y, y_ref, rtol=1e-6, atol=1e-6), "mismatch vs reference"

    # Eval mode / drop_prob=0 must be identity.
    y_eval = drop_path_pallas(x, kmask, drop_prob=drop_prob, training=False)
    assert jnp.array_equal(y_eval, x)
    y_p0 = drop_path_pallas(x, kmask, drop_prob=0.0, training=True)
    assert jnp.array_equal(y_p0, x)

    print("KERNEL_OK")
</pallas_src>

<mosaic_0001>
module attributes {stable_mosaic.version = 11 : i64} {
  func.func @_drop_path_kernel(%arg0: i32, %arg1: i32, %arg2: memref<2x1xf32, #tpu.memory_space<vmem>>, %arg3: memref<2x1024xf32, #tpu.memory_space<vmem>>, %arg4: memref<2x1024xf32, #tpu.memory_space<vmem>>) attributes {dimension_semantics = [#tpu.dimension_semantics<parallel>, #tpu.dimension_semantics<parallel>], iteration_bounds = array<i64: 1, 1>, scalar_prefetch = 0 : i64, scratch_operands = 0 : i64, tpu.core_type = #tpu.core_type<tc>, window_params = [{transform_indices = @transform_0, window_bounds = array<i64: 2, 1>}, {transform_indices = @transform_1, window_bounds = array<i64: 2, 1024>}, {transform_indices = @transform_2, window_bounds = array<i64: 2, 1024>}]} {
    %c0 = arith.constant 0 : index
    %c0_0 = arith.constant 0 : index
    %0 = vector.load %arg2[%c0, %c0_0] : memref<2x1xf32, #tpu.memory_space<vmem>>, vector<2x1xf32>
    %cst = arith.constant 5.000000e-01 : f32
    %1 = vector.broadcast %cst : f32 to vector<2x1xf32>
    %2 = arith.cmpf olt, %0, %1 : vector<2x1xf32>
    %cst_1 = arith.constant 2.000000e+00 : f32
    %cst_2 = arith.constant 0.000000e+00 : f32
    %3 = vector.broadcast %cst_1 : f32 to vector<2x1xf32>
    %4 = vector.broadcast %cst_2 : f32 to vector<2x1xf32>
    %5 = arith.select %2, %3, %4 : vector<2x1xi1>, vector<2x1xf32>
    %c0_3 = arith.constant 0 : index
    %c0_4 = arith.constant 0 : index
    %6 = vector.load %arg3[%c0_3, %c0_4] : memref<2x1024xf32, #tpu.memory_space<vmem>>, vector<2x1024xf32>
    %7 = vector.broadcast %5 : vector<2x1xf32> to vector<2x1024xf32>
    %8 = arith.mulf %6, %7 : vector<2x1024xf32>
    %c0_5 = arith.constant 0 : index
    %c0_6 = arith.constant 0 : index
    %9 = vector.load %arg4[%c0_5, %c0_6] : memref<2x1024xf32, #tpu.memory_space<vmem>>, vector<2x1024xf32>
    tpu.vector_store %arg4[%c0_5, %c0_6], %8 {strides = array<i32>} : memref<2x1024xf32, #tpu.memory_space<vmem>>, vector<2x1024xf32>,
    return
  }
  func.func @transform_0(%arg0: i32, %arg1: i32) -> (i32, i32) {
    %c0_i32 = arith.constant 0 : i32
    %c0_i32_0 = arith.constant 0 : i32
    return %arg0, %c0_i32 : i32, i32
  }
  func.func @transform_1(%arg0: i32, %arg1: i32) -> (i32, i32) {
    %c0_i32 = arith.constant 0 : i32
    return %arg0, %arg1 : i32, i32
  }
  func.func @transform_2(%arg0: i32, %arg1: i32) -> (i32, i32) {
    %c0_i32 = arith.constant 0 : i32
    return %arg0, %arg1 : i32, i32
  }
}

</mosaic_0001>

<llo_original>
// kernel: tpu_custom_call.1
$region0: #{tpu_custom_call.1}
  #allocation0 [shape = 'u32[]', space=smem, size = 0x4, offset = 0x4, fixed_abs, tag = 'smem constant byte address 0x4 - core index']
  #allocation1 [shape = 'u32[72,128]{1,0:T(1,128)}', space=vmem, size = 0x9000, scoped, tag = 'internal scratch']
  %s0 = inlined_call_operand.vmem [shape: f32[2,1], index: 0, kind: input, shape index: {}]
  %s1 = inlined_call_operand.hbm [shape: f32[2,1024], index: 1, kind: input, shape index: {}]
  %s2 = inlined_call_operand.hbm [shape: f32[2,1024], index: 2, kind: output, shape index: {}]
  %s3 = sld [smem:[#allocation0]]
  $region22: #{tpu_custom_call.1} parent=0
    _
  %s5 = ssub.s32 1, %s3
  %s6 = scalar_select 0, %s5, %s3
  $region1: #{tpu_custom_call.1} parent=0
    #allocation2 [shape = 'u8[8192]{0}', space=vmem, size = 0x2000, scoped, tag = 'input window, operand 1, single buffered']
    #allocation3 [shape = 's32[1]{0}', space=sflag, size = 0x4, scoped, tag = 'scoped memory for tpu_custom_call.1']
    #allocation4 [shape = 's32[1]{0}', space=sflag, size = 0x4, scoped, tag = 'scoped memory for tpu_custom_call.1']
    #allocation5 [shape = 'u8[8192]{0}', space=vmem, size = 0x2000, scoped, tag = 'output window, operand 0, single buffered']
    %7 = vsyncpa [#allocation3], 0
    %8 = vsyncpa [#allocation4], 0
    // Predicated region
    $region2: #{tpu_custom_call.1} parent=1 // pred_check
      _
    $region3: #{tpu_custom_call.1} parent=1 // pred_check_branch
      %10 = sbr.rel (0) target = $region5
    $region4: #{tpu_custom_call.1} parent=1 // pred_region
      _
    $region5: #{tpu_custom_call.1} parent=1 // pred_fallthru
      _
    // Predicated region
    $region6: #{tpu_custom_call.1} parent=1 // pred_check
      _
    $region7: #{tpu_custom_call.1} parent=1 // pred_check_branch
      %12 = sbr.rel (0) target = $region9
    $region8: #{tpu_custom_call.1} parent=1 // pred_region
      %14 = vsyncadd [#allocation3], 0
      %s16 = sshll.u32 %s1, 4
      %s17 = int_to_ptr.hbm [resolvable:$true] %s16
      %s18 = sshll.u32 [#allocation2], 4
      %s19 = int_to_ptr.vmem [resolvable:$true] %s18
      %21 = dma.hbm_to_vmem [thread:$0]  %s17, 256, %s19, [#allocation3]
    $region9: #{tpu_custom_call.1} parent=1 // pred_fallthru
      _
    // Predicated region
    $region10: #{tpu_custom_call.1} parent=1 // pred_check
      _
    $region11: #{tpu_custom_call.1} parent=1 // pred_check_branch
      %23 = sbr.rel (0) target = $region13
    $region12: #{tpu_custom_call.1} parent=1 // pred_region
      %25 = dma.done [#allocation3], 256
    $region13: #{tpu_custom_call.1} parent=1 // pred_fallthru
      _
    %v26 = vld [vmem:[%s0] sm:$0x3]
    %vm27 = vcmp.lt.f32.partialorder %v26, 0.5
    %v28 = vsel %vm27, 2.0, 0.0
    %v29 = vld [vmem:[#allocation2] sm:$0xff]
    %v30 = vld [vmem:[#allocation2 + $0x8] sm:$0xff]
    %32 = vset.pattern.permute.xlu0 0
    %33 = vperm.xlu0 %32, %v28
    %v34 = vpop.permute.xlu0 %33
    %v36 = vunpack.c.l.s4 269488144
    %v37 = vunpack.c.0.s8 %v36
    %v38 = vperm.slane %v34, %v37
    %v40 = vmul.f32 %v29, %v38
    %v41 = vmul.f32 %v30, %v38
    %42 = vst [vmem:[#allocation5] sm:$0xff] %v40
    %43 = vst [vmem:[#allocation5 + $0x8] sm:$0xff] %v41
    // Predicated region
    $region14: #{tpu_custom_call.1} parent=1 // pred_check
      _
    $region15: #{tpu_custom_call.1} parent=1 // pred_check_branch
      %45 = sbr.rel (0) target = $region17
    $region16: #{tpu_custom_call.1} parent=1 // pred_region
      %47 = vsyncadd [#allocation4], 0
      %s49 = sshll.u32 [#allocation5], 4
      %s50 = int_to_ptr.vmem [resolvable:$true] %s49
      %s51 = sshll.u32 %s2, 4
      %s52 = int_to_ptr.hbm [resolvable:$true] %s51
      %54 = dma.vmem_to_hbm [thread:$0]  %s50, 256, %s52, [#allocation4]
    $region17: #{tpu_custom_call.1} parent=1 // pred_fallthru
      _
    // Predicated region
    $region18: #{tpu_custom_call.1} parent=1 // pred_check
      _
    $region19: #{tpu_custom_call.1} parent=1 // pred_check_branch
      %56 = sbr.rel (0) target = $region21
    $region20: #{tpu_custom_call.1} parent=1 // pred_region
      %58 = dma.done [#allocation4], 256
    $region21: #{tpu_custom_call.1} parent=1 // pred_fallthru
      _
    %59 = vsyncpa [#allocation3], 1
    %60 = vsyncpa [#allocation4], 1

</llo_original>
